<compile_context>
chip_gen: v7x
topology: tpu7x:2x2x1
jax: 0.10.0
libtpu: 0.0.40
codegen_flags: <defaults>
</compile_context>

<pallas_src>
import jax
import jax.numpy as jnp
from jax.experimental import pallas as pl
from jax.experimental.pallas import tpu as pltpu


def _round_up(x, m):
    return (x + m - 1) // m * m


def _stem_kernel(p_ref, w_ref, aff_ref, o_ref):
    # (Cout, K) @ (K, tm) -> (Cout, tm) on the MXU, fp32 accumulation.
    y = jnp.dot(w_ref[...], p_ref[...], preferred_element_type=jnp.float32)
    bias = aff_ref[:, 0:1]      # conv bias            (per output channel)
    scale = aff_ref[:, 1:2]     # gamma / sqrt(var+eps)
    shift = aff_ref[:, 2:3]     # beta - mean * scale
    y = y + bias
    y = jnp.maximum(y, 0.0)     # ReLU (must precede BN affine)
    y = y * scale + shift       # BatchNorm (eval) affine
    o_ref[...] = y.astype(o_ref.dtype)


def stem_forward(x, conv_w, conv_b, bn_gamma, bn_beta, bn_mean, bn_var, *,
                 eps=1e-5, tm=1024, compute_dtype=jnp.bfloat16,
                 nchw_output=True):
    """x: (N, Cin, H, W).  Returns (N, Cout, H//2, W//2) (NCHW) by default.

    Set nchw_output=False to get (Cout, N, Ho, Wo) and skip the final
    layout transpose (consumers can fuse it).
    """
    N, Cin, H, W = x.shape
    Cout = conv_w.shape[0]
    KH = KW = 4
    Ho, Wo = H // 2, W // 2
    K = Cin * KH * KW
    M = N * Ho * Wo

    # ---- im2col (pad=1, stride=2, k=4) built directly in (K, M) layout ----
    xp = jnp.pad(x, ((0, 0), (0, 0), (1, 1), (1, 1)))
    cols = [xp[:, :, kh:kh + 2 * Ho:2, kw:kw + 2 * Wo:2]          # (N,Cin,Ho,Wo)
            for kh in range(KH) for kw in range(KW)]
    pat = jnp.stack(cols, axis=2).reshape(N, K, Ho * Wo)          # (N, K, Ho*Wo)
    patT = jnp.transpose(pat, (1, 0, 2)).reshape(K, M)            # (K, M)
    patT = patT.astype(compute_dtype)

    # pad M so the lane-dense grid tiles evenly (tm always a multiple of 128)
    tm = min(tm, _round_up(M, 128))
    Mp = _round_up(M, tm)
    if Mp != M:
        patT = jnp.pad(patT, ((0, 0), (0, Mp - M)))

    # flattened conv weight: (Cout, Cin, 4, 4) -> (Cout, K), bf16
    wT = conv_w.reshape(Cout, K).astype(compute_dtype)

    # BN(eval) folded into per-channel affine applied after ReLU
    inv_std = 1.0 / jnp.sqrt(bn_var + eps)
    scale = bn_gamma * inv_std
    shift = bn_beta - bn_mean * scale
    aff = jnp.stack([conv_b, scale, shift], axis=1).astype(jnp.float32)  # (Cout,3)

    # pad channels to a sublane multiple for the (Cout, tm) output tiles
    Cp = _round_up(Cout, 8)
    if Cp != Cout:
        wT = jnp.pad(wT, ((0, Cp - Cout), (0, 0)))
        aff = jnp.pad(aff, ((0, Cp - Cout), (0, 0)))

    grid = (Mp // tm,)
    itemsize = jnp.dtype(compute_dtype).itemsize
    cost = pl.CostEstimate(
        flops=2 * Mp * K * Cp,
        transcendentals=0,
        bytes_accessed=(K * Mp * itemsize + Cp * K * itemsize
                        + Cp * 3 * 4 + Cp * Mp * 4),
    )

    out2d = pl.pallas_call(
        _stem_kernel,
        out_shape=jax.ShapeDtypeStruct((Cp, Mp), x.dtype),
        grid_spec=pltpu.PrefetchScalarGridSpec(
            num_scalar_prefetch=0,
            grid=grid,
            in_specs=[
                pl.BlockSpec((K, tm), lambda i: (0, i)),    # patch tile (lane dense)
                pl.BlockSpec((Cp, K), lambda i: (0, 0)),    # weight (VMEM resident)
                pl.BlockSpec((Cp, 3), lambda i: (0, 0)),    # bias / scale / shift
            ],
            out_specs=pl.BlockSpec((Cp, tm), lambda i: (0, i)),
        ),
        compiler_params=pltpu.CompilerParams(
            dimension_semantics=("parallel",),
            # allow XLA to fuse the im2col / bf16-cast producer into the
            # patch-operand fetch instead of a separate HBM round trip
            allow_input_fusion=[True, False, False],
        ),
        cost_estimate=cost,
    )(patT, wT, aff)

    out = out2d[:Cout, :M].reshape(Cout, N, Ho, Wo)
    if nchw_output:
        out = jnp.transpose(out, (1, 0, 2, 3))   # back to PyTorch NCHW
    return out


def reference_forward(x, conv_w, conv_b, bn_gamma, bn_beta, bn_mean, bn_var,
                      *, eps=1e-5, compute_dtype=jnp.float32):
    y = jax.lax.conv_general_dilated(
        x.astype(compute_dtype), conv_w.astype(compute_dtype),
        window_strides=(2, 2), padding=((1, 1), (1, 1)),
        dimension_numbers=("NCHW", "OIHW", "NCHW"),
        preferred_element_type=jnp.float32)
    y = y + conv_b.reshape(1, -1, 1, 1)
    y = jnp.maximum(y, 0.0)
    inv_std = 1.0 / jnp.sqrt(bn_var + eps)
    y = y * (bn_gamma * inv_std).reshape(1, -1, 1, 1) \
        + (bn_beta - bn_mean * bn_gamma * inv_std).reshape(1, -1, 1, 1)
    return y  # dropout(eval) = identity


if __name__ == "__main__":
    key = jax.random.PRNGKey(0)
    k_x, k_w, k_b, k_g, k_be, k_m, k_v = jax.random.split(key, 7)

    N, Cin, H, W = 2, 4, 16, 16
    Cout = 8

    x = jax.random.normal(k_x, (N, Cin, H, W), dtype=jnp.float32)
    conv_w = 0.1 * jax.random.normal(k_w, (Cout, Cin, 4, 4), dtype=jnp.float32)
    conv_b = 0.1 * jax.random.normal(k_b, (Cout,), dtype=jnp.float32)
    bn_gamma = 1.0 + 0.1 * jax.random.normal(k_g, (Cout,), dtype=jnp.float32)
    bn_beta = 0.1 * jax.random.normal(k_be, (Cout,), dtype=jnp.float32)
    bn_mean = 0.1 * jax.random.normal(k_m, (Cout,), dtype=jnp.float32)
    bn_var = jnp.abs(1.0 + 0.1 * jax.random.normal(k_v, (Cout,), dtype=jnp.float32))

    out = stem_forward(x, conv_w, conv_b, bn_gamma, bn_beta, bn_mean, bn_var)
    out = jax.block_until_ready(out)
    assert out.shape == (N, Cout, H // 2, W // 2), out.shape

    # reference with the same bf16 input/weight cast (fp32 accumulation)
    ref = reference_forward(x, conv_w, conv_b, bn_gamma, bn_beta, bn_mean, bn_var,
                            compute_dtype=jnp.bfloat16)
    err = float(jnp.max(jnp.abs(out - ref)))
    assert jnp.allclose(out, ref, atol=1e-2, rtol=1e-2), err

    print("KERNEL_OK")
</pallas_src>

<mosaic_0001>
module attributes {stable_mosaic.version = 11 : i64} {
  func.func @_stem_kernel(%arg0: i32, %arg1: memref<64x128xbf16, #tpu.memory_space<vmem>>, %arg2: memref<8x64xbf16, #tpu.memory_space<vmem>>, %arg3: memref<8x3xf32, #tpu.memory_space<vmem>>, %arg4: memref<8x128xf32, #tpu.memory_space<vmem>>) attributes {dimension_semantics = [#tpu.dimension_semantics<parallel>], iteration_bounds = array<i64: 1>, scalar_prefetch = 0 : i64, scratch_operands = 0 : i64, tpu.core_type = #tpu.core_type<tc>, window_params = [{transform_indices = @transform_0, window_bounds = array<i64: 64, 128>}, {pipeline_mode = #tpu.pipeline_mode<synchronous>, transform_indices = @transform_1, window_bounds = array<i64: 8, 64>}, {pipeline_mode = #tpu.pipeline_mode<synchronous>, transform_indices = @transform_2, window_bounds = array<i64: 8, 3>}, {transform_indices = @transform_3, window_bounds = array<i64: 8, 128>}]} {
    %c0 = arith.constant 0 : index
    %c0_0 = arith.constant 0 : index
    %0 = vector.load %arg2[%c0, %c0_0] : memref<8x64xbf16, #tpu.memory_space<vmem>>, vector<8x64xbf16>
    %c0_1 = arith.constant 0 : index
    %c0_2 = arith.constant 0 : index
    %1 = vector.load %arg1[%c0_1, %c0_2] : memref<64x128xbf16, #tpu.memory_space<vmem>>, vector<64x128xbf16>
    %cst = arith.constant dense<0.000000e+00> : vector<8x128xf32>
    %2 = tpu.matmul %0, %1, %cst {dimension_numbers = #tpu.dot_dimension_numbers<[1], [0], [0], [1], [0, 0, 1, 1], [], []>} : vector<8x64xbf16>, vector<64x128xbf16>, vector<8x128xf32> -> vector<8x128xf32>
    %c0_3 = arith.constant 0 : index
    %c0_4 = arith.constant 0 : index
    %3 = vector.load %arg3[%c0_3, %c0_4] : memref<8x3xf32, #tpu.memory_space<vmem>>, vector<8x1xf32>
    %c0_5 = arith.constant 0 : index
    %c1 = arith.constant 1 : index
    %4 = vector.load %arg3[%c0_5, %c1] : memref<8x3xf32, #tpu.memory_space<vmem>>, vector<8x1xf32>
    %c0_6 = arith.constant 0 : index
    %c2 = arith.constant 2 : index
    %5 = vector.load %arg3[%c0_6, %c2] : memref<8x3xf32, #tpu.memory_space<vmem>>, vector<8x1xf32>
    %6 = vector.broadcast %3 : vector<8x1xf32> to vector<8x128xf32>
    %7 = arith.addf %2, %6 : vector<8x128xf32>
    %cst_7 = arith.constant 0.000000e+00 : f32
    %8 = vector.broadcast %cst_7 : f32 to vector<8x128xf32>
    %9 = arith.maximumf %7, %8 : vector<8x128xf32>
    %10 = vector.broadcast %4 : vector<8x1xf32> to vector<8x128xf32>
    %11 = arith.mulf %9, %10 : vector<8x128xf32>
    %12 = vector.broadcast %5 : vector<8x1xf32> to vector<8x128xf32>
    %13 = arith.addf %11, %12 : vector<8x128xf32>
    %c0_8 = arith.constant 0 : index
    %c0_9 = arith.constant 0 : index
    %14 = vector.load %arg4[%c0_8, %c0_9] : memref<8x128xf32, #tpu.memory_space<vmem>>, vector<8x128xf32>
    tpu.vector_store %arg4[%c0_8, %c0_9], %13 {strides = array<i32>} : memref<8x128xf32, #tpu.memory_space<vmem>>, vector<8x128xf32>,
    return
  }
  func.func @transform_0(%arg0: i32) -> (i32, i32) {
    %c0_i32 = arith.constant 0 : i32
    %c0_i32_0 = arith.constant 0 : i32
    return %c0_i32, %arg0 : i32, i32
  }
  func.func @transform_1(%arg0: i32) -> (i32, i32) {
    %c0_i32 = arith.constant 0 : i32
    %c0_i32_0 = arith.constant 0 : i32
    %c0_i32_1 = arith.constant 0 : i32
    return %c0_i32, %c0_i32_0 : i32, i32
  }
  func.func @transform_2(%arg0: i32) -> (i32, i32) {
    %c0_i32 = arith.constant 0 : i32
    %c0_i32_0 = arith.constant 0 : i32
    %c0_i32_1 = arith.constant 0 : i32
    return %c0_i32, %c0_i32_0 : i32, i32
  }
  func.func @transform_3(%arg0: i32) -> (i32, i32) {
    %c0_i32 = arith.constant 0 : i32
    %c0_i32_0 = arith.constant 0 : i32
    return %c0_i32, %arg0 : i32, i32
  }
}

</mosaic_0001>

<llo_original>
// kernel: tpu_custom_call.1
$region0: #{tpu_custom_call.1}
  #allocation0 [shape = 'u32[]', space=smem, size = 0x4, offset = 0x4, fixed_abs, tag = 'smem constant byte address 0x4 - core index']
  #allocation1 [shape = 'u32[144,128]{1,0:T(1,128)}', space=vmem, size = 0x12000, scoped, tag = 'internal scratch']
  %s0 = inlined_call_operand.hbm [shape: bf16[64,128], index: 0, kind: input, shape index: {}]
  %s1 = inlined_call_operand.vmem [shape: bf16[8,64], index: 1, kind: input, shape index: {}]
  %s2 = inlined_call_operand.vmem [shape: f32[8,3], index: 2, kind: input, shape index: {}]
  %s3 = inlined_call_operand.hbm [shape: f32[8,128], index: 3, kind: output, shape index: {}]
  %s4 = sld [smem:[#allocation0]]
  $region26: #{tpu_custom_call.1} parent=0
    _
  %s6 = ssub.s32 1, %s4
  %s7 = scalar_select 0, %s6, %s4
  $region1: #{tpu_custom_call.1} parent=0
    #allocation2 [shape = 'u8[16384]{0}', space=vmem, size = 0x4000, scoped, tag = 'input window, operand 0, single buffered']
    #allocation3 [shape = 's32[1]{0}', space=sflag, size = 0x4, scoped, tag = 'scoped memory for tpu_custom_call.1']
    #allocation4 [shape = 's32[1]{0}', space=sflag, size = 0x4, scoped, tag = 'scoped memory for tpu_custom_call.1']
    #allocation5 [shape = 'u8[4096]{0}', space=vmem, size = 0x1000, scoped, tag = 'output window, operand 0, single buffered']
    %8 = vsyncpa [#allocation3], 0
    %9 = vsyncpa [#allocation4], 0
    // Predicated region
    $region2: #{tpu_custom_call.1} parent=1 // pred_check
      _
    $region3: #{tpu_custom_call.1} parent=1 // pred_check_branch
      %11 = sbr.rel (0) target = $region5
    $region4: #{tpu_custom_call.1} parent=1 // pred_region
      %s13 = ssub.s32 512, 512
      %14 = vsyncadd [#allocation3], %s13
      %s15 = sshll.u32 [#allocation2], 4
      %s16 = int_to_ptr.vmem [resolvable:$true] %s15
      %21 = dma.hbm_to_vmem [thread:$0]  %s0, 512, %s16, [#allocation3], 64, 64, 4
    $region5: #{tpu_custom_call.1} parent=1 // pred_fallthru
      _
    // Predicated region
    $region6: #{tpu_custom_call.1} parent=1 // pred_check
      _
    $region7: #{tpu_custom_call.1} parent=1 // pred_check_branch
      %23 = sbr.rel (0) target = $region9
    $region8: #{tpu_custom_call.1} parent=1 // pred_region
      _
    $region9: #{tpu_custom_call.1} parent=1 // pred_fallthru
      _
    // Predicated region
    $region10: #{tpu_custom_call.1} parent=1 // pred_check
      _
    $region11: #{tpu_custom_call.1} parent=1 // pred_check_branch
      %25 = sbr.rel (0) target = $region13
    $region12: #{tpu_custom_call.1} parent=1 // pred_region
      _
    $region13: #{tpu_custom_call.1} parent=1 // pred_fallthru
      _
    // Predicated region
    $region14: #{tpu_custom_call.1} parent=1 // pred_check
      _
    $region15: #{tpu_custom_call.1} parent=1 // pred_check_branch
      %27 = sbr.rel (0) target = $region17
    $region16: #{tpu_custom_call.1} parent=1 // pred_region
      %28 = dma.done [#allocation3], 512
    $region17: #{tpu_custom_call.1} parent=1 // pred_fallthru
      _
    %v30 = vld [vmem:[%s1] sm:$0xf]
    %v31 = vld [vmem:[#allocation2] sm:$0xf]
    %v32 = vld [vmem:[#allocation2 + $0x4] sm:$0xf]
    %v33 = vld [vmem:[#allocation2 + $0x8] sm:$0xf]
    %v34 = vld [vmem:[#allocation2 + $0xc] sm:$0xf]
    %v35 = vld [vmem:[#allocation2 + $0x10] sm:$0xf]
    %v36 = vld [vmem:[#allocation2 + $0x14] sm:$0xf]
    %v37 = vld [vmem:[#allocation2 + $0x18] sm:$0xf]
    %v38 = vld [vmem:[#allocation2 + $0x1c] sm:$0xf]
    %v39 = vld [vmem:[%s2] sm:$0xff]
    %41 = vset.pattern.permute.xlu0 0
    %42 = vperm.xlu0 %41, %v39
    %v43 = vpop.permute.xlu0 %42
    %v53 = vunpack.c.l.b16 %v31
    %v54 = vunpack.c.l.b16 %v32
    %v55 = vunpack.c.l.b16 %v33
    %v56 = vunpack.c.l.b16 %v34
    %v57 = vunpack.c.l.b16 %v35
    %v58 = vunpack.c.l.b16 %v36
    %v59 = vunpack.c.l.b16 %v37
    %v60 = vunpack.c.l.b16 %v38
    %v61 = vpack.c.b16 %v54, %v53
    %v62 = vpack.c.b16 %v56, %v55
    %v63 = vpack.c.b16 %v58, %v57
    %v64 = vpack.c.b16 %v60, %v59
    %vm69 = vcmask 523264
    %v71 = vsel %vm69, %v30, 0
    %73 = vmatprep.subr.bf16.mxu0 0
    %74 = vmatpush1.bf16.msra.mxu0 %v61
    %75 = vmatprep.subr.bf16.mxu0 0
    %76 = vmatpush1.bf16.msra.mxu0 %v62
    %77 = vmatprep.subr.bf16.mxu0 0
    %78 = vmatpush1.bf16.msra.mxu0 %v63
    %79 = vmatprep.subr.bf16.mxu0 0
    %80 = vmatpush1.bf16.msra.mxu0 %v64
    %81 = vmatprep.subr.bf16.mxu0 0
    %82 = vmatpush1.bf16.msra.mxu0 0
    %83 = vmatprep.subr.bf16.mxu0 0
    %84 = vmatpush1.bf16.msra.mxu0 0
    %85 = vmatprep.subr.bf16.mxu0 0
    %86 = vmatpush1.bf16.msra.mxu0 0
    %87 = vmatprep.subr.bf16.mxu0 0
    %88 = vmatpush1.bf16.msra.mxu0 0
    %89 = vmatprep.subr.bf16.mxu0 0
    %90 = vmatpush1.bf16.msra.mxu0 0
    %91 = vmatprep.subr.bf16.mxu0 0
    %92 = vmatpush1.bf16.msra.mxu0 0
    %93 = vmatprep.subr.bf16.mxu0 0
    %94 = vmatpush1.bf16.msra.mxu0 0
    %95 = vmatprep.subr.bf16.mxu0 0
    %96 = vmatpush1.bf16.msra.mxu0 0
    %97 = vmatprep.subr.bf16.mxu0 0
    %98 = vmatpush1.bf16.msra.mxu0 0
    %99 = vmatprep.subr.bf16.mxu0 0
    %100 = vmatpush1.bf16.msra.mxu0 0
    %101 = vmatprep.subr.bf16.mxu0 0
    %102 = vmatpush1.bf16.msra.mxu0 0
    %103 = vmatprep.subr.bf16.mxu0 0
    %104 = vmatpush1.bf16.msra.mxu0 0
    %105 = vmatprep.mubr.bf16.mxu0 0
    %106 = vmatmul.mubr.bf16.gmra.mrb[0].mxu0 %v71
    %v107 = vpop.f32.mrb[0].mxu0
    %v108 = vadd.f32 %v43, %v107
    %v109 = vpop.f32.mrb[0].mxu0
    %v110 = vpop.f32.mrb[0].mxu0
    %v111 = vpop.f32.mrb[0].mxu0
    %112 = vdwg.mxu0
    %v113 = vmax.f32 %v108, 0.0
    %114 = vset.pattern.permute.xlu0 1
    %115 = vperm.xlu0 %114, %v39
    %v116 = vpop.permute.xlu0 %115
    %v118 = vmul.f32 %v113, %v116
    %119 = vset.pattern.permute.xlu0 2
    %120 = vperm.xlu0 %119, %v39
    %v121 = vpop.permute.xlu0 %120
    %v123 = vadd.f32 %v118, %v121
    %124 = vst [vmem:[#allocation5] sm:$0xff] %v123
    // Predicated region
    $region18: #{tpu_custom_call.1} parent=1 // pred_check
      _
    $region19: #{tpu_custom_call.1} parent=1 // pred_check_branch
      %126 = sbr.rel (0) target = $region21
    $region20: #{tpu_custom_call.1} parent=1 // pred_region
      %s128 = ssub.s32 128, 128
      %129 = vsyncadd [#allocation4], %s128
      %s131 = sshll.u32 [#allocation5], 4
      %s132 = int_to_ptr.vmem [resolvable:$true] %s131
      %134 = dma.vmem_to_hbm [thread:$0]  %s132, 128, %s3, [#allocation4]
    $region21: #{tpu_custom_call.1} parent=1 // pred_fallthru
      _
    // Predicated region
    $region22: #{tpu_custom_call.1} parent=1 // pred_check
      _
    $region23: #{tpu_custom_call.1} parent=1 // pred_check_branch
      %136 = sbr.rel (0) target = $region25
    $region24: #{tpu_custom_call.1} parent=1 // pred_region
      %137 = dma.done [#allocation4], 128
    $region25: #{tpu_custom_call.1} parent=1 // pred_fallthru
      _
    %138 = vsyncpa [#allocation3], 1
    %139 = vsyncpa [#allocation4], 1

</llo_original>
